<compile_context>
chip_gen: v7x
topology: tpu7x:2x2x1
jax: 0.10.0
libtpu: 0.0.40
codegen_flags: <defaults>
</compile_context>

<pallas_src>
import functools

import jax
import jax.numpy as jnp
from jax.experimental import pallas as pl
from jax.experimental.pallas import tpu as pltpu

LANE = 128
SUBLANE = 8


def _round_up(x, m):
    return (x + m - 1) // m * m


# ----------------------------------------------------------------------------
# Kernel
# ----------------------------------------------------------------------------
def _qfunc_kernel(meta, latent_ref, action_ref, params_ref, o_ref):
    """Fused MLP forward: concat + every Linear + ReLU in one kernel.

    meta is a static dict of row offsets into the packed parameter buffer.
    All parameter blocks are zero-padded to 128 lanes, so padded activation
    columns stay exactly zero through every layer (no masking required).
    """
    latent_dim = meta["latent_dim"]
    action_dim = meta["action_dim"]

    lat = latent_ref[...].astype(jnp.float32)
    act = action_ref[...].astype(jnp.float32)

    # ---- Layer 0: fused concat via split matmul ----------------------------
    w0l = params_ref[meta["w0_lat_off"]: meta["w0_lat_off"] + latent_dim, :]
    w0a = params_ref[meta["w0_act_off"]: meta["w0_act_off"] + action_dim, :]
    b0 = params_ref[meta["b0_off"]: meta["b0_off"] + 1, :]
    h = (jnp.dot(lat, w0l, preferred_element_type=jnp.float32)
         + jnp.dot(act, w0a, preferred_element_type=jnp.float32)
         + b0)
    h = jnp.maximum(h, 0.0)

    # ---- Hidden layers: (TB,128) @ (128,128), zero-padded -> exact ----------
    for w_off, b_off in meta["mid"]:
        w = params_ref[w_off: w_off + LANE, :]
        b = params_ref[b_off: b_off + 1, :]
        h = jnp.dot(h, w, preferred_element_type=jnp.float32) + b
        h = jnp.maximum(h, 0.0)

    # ---- Last layer (hidden -> 1): VPU mul + lane reduction ------------------
    w_last = params_ref[meta["wlast_off"]: meta["wlast_off"] + 1, :]   # (1,128)
    b_last = params_ref[meta["blast_off"]: meta["blast_off"] + 1, :][:, 0:1]
    q = jnp.sum(h * w_last, axis=-1, keepdims=True) + b_last
    # TODO(synk): for very large batches, present Q lane-dense (e.g. reshape to
    # (B//128, 128)) to avoid lane-sparse vst.msk stores; kept (B, 1) to match
    # the module's output contract.
    o_ref[...] = q.astype(o_ref.dtype)


# ----------------------------------------------------------------------------
# Parameter packing (one contiguous, padded f32 buffer + static offsets)
# ----------------------------------------------------------------------------
def pack_qfunction_params(weights, biases, latent_dim, action_dim):
    assert all(w.shape[1] <= LANE for w in weights), "hidden dims must be <= 128"
    assert all(w.shape[0] <= LANE for w in weights[1:]), "hidden dims must be <= 128"

    blocks = []
    row = 0
    meta = {"latent_dim": latent_dim, "action_dim": action_dim, "mid": []}

    def add_block(arr2d, rows):
        nonlocal row
        arr2d = jnp.asarray(arr2d, jnp.float32)
        pad = jnp.zeros((rows, LANE), jnp.float32)
        pad = pad.at[: arr2d.shape[0], : arr2d.shape[1]].set(arr2d)
        blocks.append(pad)
        off = row
        row += rows
        return off

    n_layers = len(weights)
    w0, b0 = weights[0], biases[0]
    meta["w0_lat_off"] = add_block(w0[:latent_dim], _round_up(latent_dim, SUBLANE))
    meta["w0_act_off"] = add_block(w0[latent_dim:], _round_up(action_dim, SUBLANE))
    meta["b0_off"] = add_block(jnp.reshape(b0, (1, -1)), SUBLANE)

    for i in range(1, n_layers - 1):
        w_off = add_block(weights[i], LANE)             # rows padded to 128
        b_off = add_block(jnp.reshape(biases[i], (1, -1)), SUBLANE)
        meta["mid"].append((w_off, b_off))

    # Last layer weight stored transposed as a row vector (1, din).
    meta["wlast_off"] = add_block(weights[-1].T, SUBLANE)
    meta["blast_off"] = add_block(jnp.reshape(biases[-1], (1, -1)), SUBLANE)

    params = jnp.concatenate(blocks, axis=0)            # (total_rows, 128) f32
    return params, meta


# ----------------------------------------------------------------------------
# Wrapper
# ----------------------------------------------------------------------------
def qfunction_forward(latent, action, params, meta, *, block_batch=None):
    """Equivalent of QFunction.forward(latent, action)."""
    batch = latent.shape[0]
    latent_dim = meta["latent_dim"]
    action_dim = meta["action_dim"]

    # Batch tile: as big as reasonable but bounded (sized comfortably under the
    # v7x 64 MiB VMEM budget with double-buffered input/output tiles).
    if block_batch is None:
        block_batch = min(_round_up(batch, SUBLANE), 512)
    padded_batch = _round_up(batch, block_batch)
    if padded_batch != batch:
        pad = padded_batch - batch
        latent = jnp.pad(latent, ((0, pad), (0, 0)))
        action = jnp.pad(action, ((0, pad), (0, 0)))

    grid = (padded_batch // block_batch,)
    kernel = functools.partial(_qfunc_kernel, meta)

    out = pl.pallas_call(
        kernel,
        out_shape=jax.ShapeDtypeStruct((padded_batch, 1), latent.dtype),
        grid=grid,
        in_specs=[
            pl.BlockSpec((block_batch, latent_dim), lambda i: (i, 0)),
            pl.BlockSpec((block_batch, action_dim), lambda i: (i, 0)),
            # Single packed parameter buffer, resident across all grid steps.
            pl.BlockSpec(params.shape, lambda i: (0, 0)),
        ],
        out_specs=pl.BlockSpec((block_batch, 1), lambda i: (i, 0)),
        compiler_params=pltpu.CompilerParams(
            dimension_semantics=("parallel",)),
    )(latent, action, params)

    return out[:batch]


# ----------------------------------------------------------------------------
# Init (mirrors PyTorch nn.Linear default init, weights stored as (in, out))
# ----------------------------------------------------------------------------
def init_qfunction_params(key, latent_dim, action_dim, net_params):
    mlp = [list(p) for p in net_params["mlp"]]
    mlp[0][0] = latent_dim + action_dim
    mlp[-1][-1] = 1

    keys = jax.random.split(key, 2 * len(mlp))
    weights, biases = [], []
    for i, (din, dout) in enumerate(mlp):
        bound = 1.0 / float(din) ** 0.5
        w = jax.random.uniform(keys[2 * i], (din, dout), jnp.float32,
                               minval=-bound, maxval=bound)
        b = jax.random.uniform(keys[2 * i + 1], (1, dout), jnp.float32,
                               minval=-bound, maxval=bound)
        weights.append(w)
        biases.append(b)
    return weights, biases


if __name__ == "__main__":
    latent_dim = 32
    action_dim = 8
    batch = 8
    net_params = {"mlp": [[0, 64], [64, 64], [64, 0]]}  # first/last dims overridden

    root = jax.random.PRNGKey(0)
    k_params, k_latent, k_action = jax.random.split(root, 3)

    weights, biases = init_qfunction_params(k_params, latent_dim, action_dim, net_params)
    params, meta = pack_qfunction_params(weights, biases, latent_dim, action_dim)

    latent = jax.random.normal(k_latent, (batch, latent_dim), jnp.float32)
    action = jax.random.normal(k_action, (batch, action_dim), jnp.float32)

    q = qfunction_forward(latent, action, params, meta)
    q = jax.block_until_ready(q)

    # Sanity checks against a pure-JAX reference of the original module.
    assert q.shape == (batch, 1), q.shape
    x = jnp.concatenate([latent, action], axis=1)
    h = x
    for i, (w, b) in enumerate(zip(weights, biases)):
        h = h @ w + b
        if i < len(weights) - 1:
            h = jnp.maximum(h, 0.0)
    assert jnp.allclose(q, h, atol=1e-5, rtol=1e-5), jnp.max(jnp.abs(q - h))

    print("KERNEL_OK")
</pallas_src>

<mosaic_0001>
module attributes {stable_mosaic.version = 11 : i64} {
  func.func @_qfunc_kernel(%arg0: i32, %arg1: memref<8x32xf32, #tpu.memory_space<vmem>>, %arg2: memref<8x8xf32, #tpu.memory_space<vmem>>, %arg3: memref<200x128xf32, #tpu.memory_space<vmem>>, %arg4: memref<8x1xf32, #tpu.memory_space<vmem>>) attributes {dimension_semantics = [#tpu.dimension_semantics<parallel>], iteration_bounds = array<i64: 1>, scalar_prefetch = 0 : i64, scratch_operands = 0 : i64, tpu.core_type = #tpu.core_type<tc>, window_params = [{transform_indices = @transform_0, window_bounds = array<i64: 8, 32>}, {transform_indices = @transform_1, window_bounds = array<i64: 8, 8>}, {pipeline_mode = #tpu.pipeline_mode<synchronous>, transform_indices = @transform_2, window_bounds = array<i64: 200, 128>}, {transform_indices = @transform_3, window_bounds = array<i64: 8, 1>}]} {
    %c0 = arith.constant 0 : index
    %c0_0 = arith.constant 0 : index
    %0 = vector.load %arg1[%c0, %c0_0] : memref<8x32xf32, #tpu.memory_space<vmem>>, vector<8x32xf32>
    %c0_1 = arith.constant 0 : index
    %c0_2 = arith.constant 0 : index
    %1 = vector.load %arg2[%c0_1, %c0_2] : memref<8x8xf32, #tpu.memory_space<vmem>>, vector<8x8xf32>
    %c0_3 = arith.constant 0 : index
    %c0_4 = arith.constant 0 : index
    %2 = vector.load %arg3[%c0_3, %c0_4] : memref<200x128xf32, #tpu.memory_space<vmem>>, vector<32x128xf32>
    %c32 = arith.constant 32 : index
    %c0_5 = arith.constant 0 : index
    %3 = vector.load %arg3[%c32, %c0_5] : memref<200x128xf32, #tpu.memory_space<vmem>>, vector<8x128xf32>
    %c40 = arith.constant 40 : index
    %c0_6 = arith.constant 0 : index
    %4 = vector.load %arg3[%c40, %c0_6] : memref<200x128xf32, #tpu.memory_space<vmem>>, vector<1x128xf32>
    %cst = arith.constant dense<0.000000e+00> : vector<8x128xf32>
    %5 = tpu.matmul %0, %2, %cst {dimension_numbers = #tpu.dot_dimension_numbers<[1], [0], [0], [1], [0, 0, 1, 1], [], []>} : vector<8x32xf32>, vector<32x128xf32>, vector<8x128xf32> -> vector<8x128xf32>
    %cst_7 = arith.constant dense<0.000000e+00> : vector<8x128xf32>
    %6 = tpu.matmul %1, %3, %cst_7 {dimension_numbers = #tpu.dot_dimension_numbers<[1], [0], [0], [1], [0, 0, 1, 1], [], []>} : vector<8x8xf32>, vector<8x128xf32>, vector<8x128xf32> -> vector<8x128xf32>
    %7 = arith.addf %5, %6 : vector<8x128xf32>
    %8 = vector.broadcast %4 : vector<1x128xf32> to vector<8x128xf32>
    %9 = arith.addf %7, %8 : vector<8x128xf32>
    %cst_8 = arith.constant 0.000000e+00 : f32
    %10 = vector.broadcast %cst_8 : f32 to vector<8x128xf32>
    %11 = arith.maximumf %9, %10 : vector<8x128xf32>
    %c48 = arith.constant 48 : index
    %c0_9 = arith.constant 0 : index
    %12 = vector.load %arg3[%c48, %c0_9] : memref<200x128xf32, #tpu.memory_space<vmem>>, vector<128x128xf32>
    %c176 = arith.constant 176 : index
    %c0_10 = arith.constant 0 : index
    %13 = vector.load %arg3[%c176, %c0_10] : memref<200x128xf32, #tpu.memory_space<vmem>>, vector<1x128xf32>
    %cst_11 = arith.constant dense<0.000000e+00> : vector<8x128xf32>
    %14 = tpu.matmul %11, %12, %cst_11 {dimension_numbers = #tpu.dot_dimension_numbers<[1], [0], [0], [1], [0, 0, 1, 1], [], []>} : vector<8x128xf32>, vector<128x128xf32>, vector<8x128xf32> -> vector<8x128xf32>
    %15 = vector.broadcast %13 : vector<1x128xf32> to vector<8x128xf32>
    %16 = arith.addf %14, %15 : vector<8x128xf32>
    %cst_12 = arith.constant 0.000000e+00 : f32
    %17 = vector.broadcast %cst_12 : f32 to vector<8x128xf32>
    %18 = arith.maximumf %16, %17 : vector<8x128xf32>
    %c184 = arith.constant 184 : index
    %c0_13 = arith.constant 0 : index
    %19 = vector.load %arg3[%c184, %c0_13] : memref<200x128xf32, #tpu.memory_space<vmem>>, vector<1x128xf32>
    %c192 = arith.constant 192 : index
    %c0_14 = arith.constant 0 : index
    %20 = vector.load %arg3[%c192, %c0_14] : memref<200x128xf32, #tpu.memory_space<vmem>>, vector<1x128xf32>
    %21 = vector.extract_strided_slice %20 {offsets = [0, 0], sizes = [1, 1], strides = [1, 1]} : vector<1x128xf32> to vector<1x1xf32>
    %22 = vector.broadcast %19 : vector<1x128xf32> to vector<8x128xf32>
    %23 = arith.mulf %18, %22 : vector<8x128xf32>
    %cst_15 = arith.constant dense<0.000000e+00> : vector<8xf32>
    %24 = vector.multi_reduction <add>, %23, %cst_15 [1] : vector<8x128xf32> to vector<8xf32>
    %25 = vector.shape_cast %24 : vector<8xf32> to vector<8x1xf32>
    %26 = vector.broadcast %21 : vector<1x1xf32> to vector<8x1xf32>
    %27 = arith.addf %25, %26 : vector<8x1xf32>
    %c0_16 = arith.constant 0 : index
    %c0_17 = arith.constant 0 : index
    %28 = vector.load %arg4[%c0_16, %c0_17] : memref<8x1xf32, #tpu.memory_space<vmem>>, vector<8x1xf32>
    tpu.vector_store %arg4[%c0_16, %c0_17], %27 {strides = array<i32>} : memref<8x1xf32, #tpu.memory_space<vmem>>, vector<8x1xf32>,
    return
  }
  func.func @transform_0(%arg0: i32) -> (i32, i32) {
    %c0_i32 = arith.constant 0 : i32
    %c0_i32_0 = arith.constant 0 : i32
    return %arg0, %c0_i32 : i32, i32
  }
  func.func @transform_1(%arg0: i32) -> (i32, i32) {
    %c0_i32 = arith.constant 0 : i32
    %c0_i32_0 = arith.constant 0 : i32
    return %arg0, %c0_i32 : i32, i32
  }
  func.func @transform_2(%arg0: i32) -> (i32, i32) {
    %c0_i32 = arith.constant 0 : i32
    %c0_i32_0 = arith.constant 0 : i32
    %c0_i32_1 = arith.constant 0 : i32
    return %c0_i32, %c0_i32_0 : i32, i32
  }
  func.func @transform_3(%arg0: i32) -> (i32, i32) {
    %c0_i32 = arith.constant 0 : i32
    %c0_i32_0 = arith.constant 0 : i32
    return %arg0, %c0_i32 : i32, i32
  }
}

</mosaic_0001>

<llo_original>
// kernel: tpu_custom_call.1
$region0: #{tpu_custom_call.1}
  #allocation0 [shape = 'u32[]', space=smem, size = 0x4, offset = 0x4, fixed_abs, tag = 'smem constant byte address 0x4 - core index']
  #allocation1 [shape = 'u32[144,128]{1,0:T(1,128)}', space=vmem, size = 0x12000, scoped, tag = 'internal scratch']
  %s0 = inlined_call_operand.hbm [shape: f32[8,32], index: 0, kind: input, shape index: {}]
  %s1 = inlined_call_operand.hbm [shape: f32[8,8], index: 1, kind: input, shape index: {}]
  %s2 = inlined_call_operand.hbm [shape: f32[200,128], index: 2, kind: input, shape index: {}]
  %s3 = inlined_call_operand.vmem [shape: f32[8,1], index: 3, kind: output, shape index: {}]
  %s4 = sld [smem:[#allocation0]]
  $region34: #{tpu_custom_call.1} parent=0
    _
  %s6 = ssub.s32 1, %s4
  %s7 = scalar_select 0, %s6, %s4
  $region1: #{tpu_custom_call.1} parent=0
    #allocation2 [shape = 'u8[4096]{0}', space=vmem, size = 0x1000, scoped, tag = 'input window, operand 0, single buffered']
    #allocation3 [shape = 's32[1]{0}', space=sflag, size = 0x4, scoped, tag = 'scoped memory for tpu_custom_call.1']
    #allocation4 [shape = 'u8[4096]{0}', space=vmem, size = 0x1000, scoped, tag = 'input window, operand 1, single buffered']
    #allocation5 [shape = 's32[1]{0}', space=sflag, size = 0x4, scoped, tag = 'scoped memory for tpu_custom_call.1']
    #allocation6 [shape = 'u8[102400]{0}', space=vmem, size = 0x19000, scoped, tag = 'input window, operand 2, single buffered']
    %8 = vsyncpa [#allocation3], 0
    %9 = vsyncpa [#allocation5], 0
    // Predicated region
    $region2: #{tpu_custom_call.1} parent=1 // pred_check
      _
    $region3: #{tpu_custom_call.1} parent=1 // pred_check_branch
      %11 = sbr.rel (0) target = $region5
    $region4: #{tpu_custom_call.1} parent=1 // pred_region
      %s13 = ssub.s32 128, 128
      %14 = vsyncadd [#allocation3], %s13
      %s16 = sshll.u32 [#allocation2], 4
      %s17 = int_to_ptr.vmem [resolvable:$true] %s16
      %19 = dma.hbm_to_vmem [thread:$0]  %s0, 128, %s17, [#allocation3]
    $region5: #{tpu_custom_call.1} parent=1 // pred_fallthru
      _
    // Predicated region
    $region6: #{tpu_custom_call.1} parent=1 // pred_check
      _
    $region7: #{tpu_custom_call.1} parent=1 // pred_check_branch
      %21 = sbr.rel (0) target = $region9
    $region8: #{tpu_custom_call.1} parent=1 // pred_region
      %s23 = ssub.s32 128, 128
      %24 = vsyncadd [#allocation5], %s23
      %s26 = sshll.u32 [#allocation4], 4
      %s27 = int_to_ptr.vmem [resolvable:$true] %s26
      %29 = dma.hbm_to_vmem [thread:$0]  %s1, 128, %s27, [#allocation5]
    $region9: #{tpu_custom_call.1} parent=1 // pred_fallthru
      _
    // Predicated region
    $region10: #{tpu_custom_call.1} parent=1 // pred_check
      _
    $region11: #{tpu_custom_call.1} parent=1 // pred_check_branch
      %31 = sbr.rel (0) target = $region13
    $region12: #{tpu_custom_call.1} parent=1 // pred_region
      %s33 = ssub.s32 3200, 3200
      %34 = vsyncadd [#allocation5], %s33
      %s35 = sshll.u32 [#allocation6], 4
      %s36 = int_to_ptr.vmem [resolvable:$true] %s35
      %41 = dma.hbm_to_vmem [thread:$0]  %s2, 3200, %s36, [#allocation5], 128, 128, 8
    $region13: #{tpu_custom_call.1} parent=1 // pred_fallthru
      _
    // Predicated region
    $region14: #{tpu_custom_call.1} parent=1 // pred_check
      _
    $region15: #{tpu_custom_call.1} parent=1 // pred_check_branch
      %43 = sbr.rel (0) target = $region17
    $region16: #{tpu_custom_call.1} parent=1 // pred_region
      %44 = dma.done [#allocation3], 128
    $region17: #{tpu_custom_call.1} parent=1 // pred_fallthru
      _
    // Predicated region
    $region18: #{tpu_custom_call.1} parent=1 // pred_check
      _
    $region19: #{tpu_custom_call.1} parent=1 // pred_check_branch
      %46 = sbr.rel (0) target = $region21
    $region20: #{tpu_custom_call.1} parent=1 // pred_region
      %47 = dma.done [#allocation5], 128
    $region21: #{tpu_custom_call.1} parent=1 // pred_fallthru
      _
    // Predicated region
    $region22: #{tpu_custom_call.1} parent=1 // pred_check
      _
    $region23: #{tpu_custom_call.1} parent=1 // pred_check_branch
      %49 = sbr.rel (0) target = $region25
    $region24: #{tpu_custom_call.1} parent=1 // pred_region
      %50 = dma.done [#allocation5], 3200
    $region25: #{tpu_custom_call.1} parent=1 // pred_fallthru
      _
    %v51 = vld [vmem:[#allocation2] sm:$0xff]
    %v52 = vld [vmem:[#allocation4] sm:$0xff]
    %v53 = vld [vmem:[#allocation6] sm:$0xff]
    %v54 = vld [vmem:[#allocation6 + $0x8] sm:$0xff]
    %v55 = vld [vmem:[#allocation6 + $0x10] sm:$0xff]
    %v56 = vld [vmem:[#allocation6 + $0x18] sm:$0xff]
    %v57 = vld [vmem:[#allocation6 + $0x20] sm:$0xff]
    %v58 = vld [vmem:[#allocation6 + $0x28] sm:$0x1]
    %vm59 = vcmask 64512
    %v61 = vsel %vm59, %v52, 0
    %63 = vmatprep.subr.mxu0 0.0
    %64 = vmatpush1.msra.mxu0 %v57
    %65 = vmatprep.subr.mxu0 0.0
    %66 = vmatpush1.msra.mxu0 0.0
    %67 = vmatprep.subr.mxu0 0.0
    %68 = vmatpush1.msra.mxu0 0.0
    %69 = vmatprep.subr.mxu0 0.0
    %70 = vmatpush1.msra.mxu0 0.0
    %71 = vmatprep.subr.mxu0 0.0
    %72 = vmatpush1.msra.mxu0 0.0
    %73 = vmatprep.subr.mxu0 0.0
    %74 = vmatpush1.msra.mxu0 0.0
    %75 = vmatprep.subr.mxu0 0.0
    %76 = vmatpush1.msra.mxu0 0.0
    %77 = vmatprep.subr.mxu0 0.0
    %78 = vmatpush1.msra.mxu0 0.0
    %79 = vmatprep.subr.mxu0 0.0
    %80 = vmatpush1.msra.mxu0 0.0
    %81 = vmatprep.subr.mxu0 0.0
    %82 = vmatpush1.msra.mxu0 0.0
    %83 = vmatprep.subr.mxu0 0.0
    %84 = vmatpush1.msra.mxu0 0.0
    %85 = vmatprep.subr.mxu0 0.0
    %86 = vmatpush1.msra.mxu0 0.0
    %87 = vmatprep.subr.mxu0 0.0
    %88 = vmatpush1.msra.mxu0 0.0
    %89 = vmatprep.subr.mxu0 0.0
    %90 = vmatpush1.msra.mxu0 0.0
    %91 = vmatprep.subr.mxu0 0.0
    %92 = vmatpush1.msra.mxu0 0.0
    %93 = vmatprep.subr.mxu0 0.0
    %94 = vmatpush1.msra.mxu0 0.0
    %95 = vmatprep.subr.mxu0 0.0
    %96 = vmatpush1.msra.mxu0 0.0
    %97 = vmatprep.subr.mxu0 0.0
    %98 = vmatpush1.msra.mxu0 0.0
    %99 = vmatprep.subr.mxu0 0.0
    %100 = vmatpush1.msra.mxu0 0.0
    %101 = vmatprep.subr.mxu0 0.0
    %102 = vmatpush1.msra.mxu0 0.0
    %103 = vmatprep.subr.mxu0 0.0
    %104 = vmatpush1.msra.mxu0 0.0
    %105 = vmatprep.subr.mxu0 0.0
    %106 = vmatpush1.msra.mxu0 0.0
    %107 = vmatprep.subr.mxu0 0.0
    %108 = vmatpush1.msra.mxu0 0.0
    %109 = vmatprep.subr.mxu0 0.0
    %110 = vmatpush1.msra.mxu0 0.0
    %111 = vmatprep.subr.mxu0 0.0
    %112 = vmatpush1.msra.mxu0 0.0
    %113 = vmatprep.subr.mxu0 0.0
    %114 = vmatpush1.msra.mxu0 0.0
    %115 = vmatprep.subr.mxu0 0.0
    %116 = vmatpush1.msra.mxu0 0.0
    %117 = vmatprep.subr.mxu0 0.0
    %118 = vmatpush1.msra.mxu0 0.0
    %119 = vmatprep.subr.mxu0 0.0
    %120 = vmatpush1.msra.mxu0 0.0
    %121 = vmatprep.subr.mxu0 0.0
    %122 = vmatpush1.msra.mxu0 0.0
    %123 = vmatprep.subr.mxu0 0.0
    %124 = vmatpush1.msra.mxu0 0.0
    %125 = vmatprep.subr.mxu0 0.0
    %126 = vmatpush1.msra.mxu0 0.0
    %127 = vmatprep.mubr.f32.mxu0 0.0
    %128 = vmatmul.mubr.f32.gmra.mrb[0].mxu0 %v61
    %v129 = vpop.f32.mrb[0].mxu0
    %v130 = vadd.f32 0.0, %v129
    %v131 = vpop.f32.mrb[0].mxu0
    %132 = vdwg.mxu0
    %vm133 = vcmask 261120
    %v135 = vsel %vm133, %v51, 0
    %137 = vmatprep.subr.mxu0 0.0
    %138 = vmatpush1.msra.mxu0 %v53
    %139 = vmatprep.subr.mxu0 0.0
    %140 = vmatpush1.msra.mxu0 %v54
    %141 = vmatprep.subr.mxu0 0.0
    %142 = vmatpush1.msra.mxu0 %v55
    %143 = vmatprep.subr.mxu0 0.0
    %144 = vmatpush1.msra.mxu0 %v56
    %145 = vmatprep.subr.mxu0 0.0
    %146 = vmatpush1.msra.mxu0 0.0
    %147 = vmatprep.subr.mxu0 0.0
    %148 = vmatpush1.msra.mxu0 0.0
    %149 = vmatprep.subr.mxu0 0.0
    %150 = vmatpush1.msra.mxu0 0.0
    %151 = vmatprep.subr.mxu0 0.0
    %152 = vmatpush1.msra.mxu0 0.0
    %153 = vmatprep.subr.mxu0 0.0
    %154 = vmatpush1.msra.mxu0 0.0
    %155 = vmatprep.subr.mxu0 0.0
    %156 = vmatpush1.msra.mxu0 0.0
    %157 = vmatprep.subr.mxu0 0.0
    %158 = vmatpush1.msra.mxu0 0.0
    %159 = vmatprep.subr.mxu0 0.0
    %160 = vmatpush1.msra.mxu0 0.0
    %161 = vmatprep.subr.mxu0 0.0
    %162 = vmatpush1.msra.mxu0 0.0
    %163 = vmatprep.subr.mxu0 0.0
    %164 = vmatpush1.msra.mxu0 0.0
    %165 = vmatprep.subr.mxu0 0.0
    %166 = vmatpush1.msra.mxu0 0.0
    %167 = vmatprep.subr.mxu0 0.0
    %168 = vmatpush1.msra.mxu0 0.0
    %169 = vmatprep.subr.mxu0 0.0
    %170 = vmatpush1.msra.mxu0 0.0
    %171 = vmatprep.subr.mxu0 0.0
    %172 = vmatpush1.msra.mxu0 0.0
    %173 = vmatprep.subr.mxu0 0.0
    %174 = vmatpush1.msra.mxu0 0.0
    %175 = vmatprep.subr.mxu0 0.0
    %176 = vmatpush1.msra.mxu0 0.0
    %177 = vmatprep.subr.mxu0 0.0
    %178 = vmatpush1.msra.mxu0 0.0
    %179 = vmatprep.subr.mxu0 0.0
    %180 = vmatpush1.msra.mxu0 0.0
    %181 = vmatprep.subr.mxu0 0.0
    %182 = vmatpush1.msra.mxu0 0.0
    %183 = vmatprep.subr.mxu0 0.0
    %184 = vmatpush1.msra.mxu0 0.0
    %185 = vmatprep.subr.mxu0 0.0
    %186 = vmatpush1.msra.mxu0 0.0
    %187 = vmatprep.subr.mxu0 0.0
    %188 = vmatpush1.msra.mxu0 0.0
    %189 = vmatprep.subr.mxu0 0.0
    %190 = vmatpush1.msra.mxu0 0.0
    %191 = vmatprep.subr.mxu0 0.0
    %192 = vmatpush1.msra.mxu0 0.0
    %193 = vmatprep.subr.mxu0 0.0
    %194 = vmatpush1.msra.mxu0 0.0
    %195 = vmatprep.subr.mxu0 0.0
    %196 = vmatpush1.msra.mxu0 0.0
    %197 = vmatprep.subr.mxu0 0.0
    %198 = vmatpush1.msra.mxu0 0.0
    %199 = vmatprep.subr.mxu0 0.0
    %200 = vmatpush1.msra.mxu0 0.0
    %201 = vmatprep.mubr.f32.mxu0 0.0
    %202 = vmatmul.mubr.f32.gmra.mrb[0].mxu0 %v135
    %v203 = vpop.f32.mrb[0].mxu0
    %v204 = vadd.f32 %v130, %v203
    %v205 = vpop.f32.mrb[0].mxu0
    %206 = vdwg.mxu0
    %v207 = vlaneseq
    %v208 = vshrl.u32 %v207, 7
    %v209 = vsub.s32 0, %v208
    %v210 = vrot.slane %v58, %v209
    %v211 = vadd.f32 %v204, %v210
    %v212 = vmax.f32 %v211, 0.0
    %v213 = vld [vmem:[#allocation6 + $0x30] sm:$0xff]
    %v214 = vld [vmem:[#allocation6 + $0x38] sm:$0xff]
    %v215 = vld [vmem:[#allocation6 + $0x40] sm:$0xff]
    %v216 = vld [vmem:[#allocation6 + $0x48] sm:$0xff]
    %v217 = vld [vmem:[#allocation6 + $0x50] sm:$0xff]
    %v218 = vld [vmem:[#allocation6 + $0x58] sm:$0xff]
    %v219 = vld [vmem:[#allocation6 + $0x60] sm:$0xff]
    %v220 = vld [vmem:[#allocation6 + $0x68] sm:$0xff]
    %v221 = vld [vmem:[#allocation6 + $0x70] sm:$0xff]
    %v222 = vld [vmem:[#allocation6 + $0x78] sm:$0xff]
    %v223 = vld [vmem:[#allocation6 + $0x80] sm:$0xff]
    %v224 = vld [vmem:[#allocation6 + $0x88] sm:$0xff]
    %v225 = vld [vmem:[#allocation6 + $0x90] sm:$0xff]
    %v226 = vld [vmem:[#allocation6 + $0x98] sm:$0xff]
    %v227 = vld [vmem:[#allocation6 + $0xa0] sm:$0xff]
    %v228 = vld [vmem:[#allocation6 + $0xa8] sm:$0xff]
    %v229 = vld [vmem:[#allocation6 + $0xb0] sm:$0x1]
    %v230 = vlaneseq
    %v231 = vshrl.u32 %v230, 7
    %v232 = vsub.s32 0, %v231
    %v233 = vrot.slane %v229, %v232
    %234 = vmatprep.subr.mxu0 0.0
    %235 = vmatpush1.msra.mxu0 %v213
    %236 = vmatprep.subr.mxu0 0.0
    %237 = vmatpush1.msra.mxu0 %v214
    %238 = vmatprep.subr.mxu0 0.0
    %239 = vmatpush1.msra.mxu0 %v215
    %240 = vmatprep.subr.mxu0 0.0
    %241 = vmatpush1.msra.mxu0 %v216
    %242 = vmatprep.subr.mxu0 0.0
    %243 = vmatpush1.msra.mxu0 %v217
    %244 = vmatprep.subr.mxu0 0.0
    %245 = vmatpush1.msra.mxu0 %v218
    %246 = vmatprep.subr.mxu0 0.0
    %247 = vmatpush1.msra.mxu0 %v219
    %248 = vmatprep.subr.mxu0 0.0
    %249 = vmatpush1.msra.mxu0 %v220
    %250 = vmatprep.subr.mxu0 0.0
    %251 = vmatpush1.msra.mxu0 %v221
    %252 = vmatprep.subr.mxu0 0.0
    %253 = vmatpush1.msra.mxu0 %v222
    %254 = vmatprep.subr.mxu0 0.0
    %255 = vmatpush1.msra.mxu0 %v223
    %256 = vmatprep.subr.mxu0 0.0
    %257 = vmatpush1.msra.mxu0 %v224
    %258 = vmatprep.subr.mxu0 0.0
    %259 = vmatpush1.msra.mxu0 %v225
    %260 = vmatprep.subr.mxu0 0.0
    %261 = vmatpush1.msra.mxu0 %v226
    %262 = vmatprep.subr.mxu0 0.0
    %263 = vmatpush1.msra.mxu0 %v227
    %264 = vmatprep.subr.mxu0 0.0
    %265 = vmatpush1.msra.mxu0 %v228
    %266 = vmatprep.subr.mxu0 0.0
    %267 = vmatpush1.msra.mxu0 0.0
    %268 = vmatprep.subr.mxu0 0.0
    %269 = vmatpush1.msra.mxu0 0.0
    %270 = vmatprep.subr.mxu0 0.0
    %271 = vmatpush1.msra.mxu0 0.0
    %272 = vmatprep.subr.mxu0 0.0
    %273 = vmatpush1.msra.mxu0 0.0
    %274 = vmatprep.subr.mxu0 0.0
    %275 = vmatpush1.msra.mxu0 0.0
    %276 = vmatprep.subr.mxu0 0.0
    %277 = vmatpush1.msra.mxu0 0.0
    %278 = vmatprep.subr.mxu0 0.0
    %279 = vmatpush1.msra.mxu0 0.0
    %280 = vmatprep.subr.mxu0 0.0
    %281 = vmatpush1.msra.mxu0 0.0
    %282 = vmatprep.subr.mxu0 0.0
    %283 = vmatpush1.msra.mxu0 0.0
    %284 = vmatprep.subr.mxu0 0.0
    %285 = vmatpush1.msra.mxu0 0.0
    %286 = vmatprep.subr.mxu0 0.0
    %287 = vmatpush1.msra.mxu0 0.0
    %288 = vmatprep.subr.mxu0 0.0
    %289 = vmatpush1.msra.mxu0 0.0
    %290 = vmatprep.subr.mxu0 0.0
    %291 = vmatpush1.msra.mxu0 0.0
    %292 = vmatprep.subr.mxu0 0.0
    %293 = vmatpush1.msra.mxu0 0.0
    %294 = vmatprep.subr.mxu0 0.0
    %295 = vmatpush1.msra.mxu0 0.0
    %296 = vmatprep.subr.mxu0 0.0
    %297 = vmatpush1.msra.mxu0 0.0
    %298 = vmatprep.mubr.f32.mxu0 0.0
    %299 = vmatmul.mubr.f32.gmra.mrb[0].mxu0 %v212
    %v300 = vpop.f32.mrb[0].mxu0
    %v301 = vadd.f32 %v233, %v300
    %v302 = vpop.f32.mrb[0].mxu0
    %303 = vdwg.mxu0
    %v304 = vmax.f32 %v301, 0.0
    %v305 = vld [vmem:[#allocation6 + $0xb8] sm:$0x1]
    %v306 = vld [vmem:[#allocation6 + $0xc0] sm:$0x1]
    %v307 = vlaneseq
    %v308 = vshrl.u32 %v307, 7
    %v309 = vsub.s32 0, %v308
    %v310 = vrot.slane %v305, %v309
    %v311 = vmul.f32 %v304, %v310
    %312 = vadd.xlane.f32.xlu0 %v311
    %v313 = vpop.xlane.xlu0 %312
    %v314 = vlaneseq
    %v315 = vshrl.u32 %v314, 7
    %v316 = vsub.s32 0, %v315
    %v317 = vrot.slane %v306, %v316
    %v318 = vadd.f32 %v313, %v317
    %vm319 = vcmask 7168
    %320 = vst.msk [vmem:[%s3] sm:$0xff] %vm319, %v318
    // Predicated region
    $region26: #{tpu_custom_call.1} parent=1 // pred_check
      _
    $region27: #{tpu_custom_call.1} parent=1 // pred_check_branch
      %322 = sbr.rel (0) target = $region29
    $region28: #{tpu_custom_call.1} parent=1 // pred_region
      _
    $region29: #{tpu_custom_call.1} parent=1 // pred_fallthru
      _
    // Predicated region
    $region30: #{tpu_custom_call.1} parent=1 // pred_check
      _
    $region31: #{tpu_custom_call.1} parent=1 // pred_check_branch
      %324 = sbr.rel (0) target = $region33
    $region32: #{tpu_custom_call.1} parent=1 // pred_region
      _
    $region33: #{tpu_custom_call.1} parent=1 // pred_fallthru
      _
    %325 = vsyncpa [#allocation3], 1
    %326 = vsyncpa [#allocation5], 1

</llo_original>
